<compile_context>
chip_gen: v5e
topology: v5e:2x2
jax: 0.10.0
libtpu: 0.0.40
codegen_flags: <defaults>
</compile_context>

<pallas_src>
import jax
import jax.numpy as jnp
from jax.experimental import pallas as pl
from jax.experimental.pallas import tpu as pltpu

_MIB = 1024 * 1024


def _vmem_budgets():
    """Generation-aware (streamed_buffer_budget, vmem_limit) in bytes.

    v5e/v6e: 128 MiB physical VMEM -> ~96 MiB scoped limit, ~72 MiB of tiles.
    v7x:      64 MiB physical     -> ~56 MiB scoped limit, ~42 MiB of tiles.
    Falls back to the v7x numbers (safe on every generation) if the query fails.
    """
    phys = None
    try:
        phys = getattr(pltpu.get_tpu_info(), "vmem_capacity_bytes", None)
    except Exception:
        phys = None
    if not phys:
        phys = 64 * _MIB
    vmem_limit = max(32 * _MIB, min(int(phys) - 8 * _MIB, 96 * _MIB))
    stream_budget = (vmem_limit * 3) // 4
    return stream_budget, int(vmem_limit)


def _per_row_bytes(d_cols: int, in_itemsize: int) -> int:
    # 3 streamed inputs x 2 pipeline buffers (input dtype) + ~8 full-tile f32
    # working arrays (casts, diffs, squares, selects) that live in VMEM while
    # the body runs.
    return 3 * 2 * d_cols * in_itemsize + 8 * d_cols * 4


def _choose_tile_rows(m_rows: int, d_cols: int, in_itemsize: int,
                      stream_budget: int) -> int:
    """Largest row tile (multiple of 8) fitting the VMEM budget, >= 2 blocks."""
    rows = max(8, (int(stream_budget // _per_row_bytes(d_cols, in_itemsize)) // 8) * 8)
    if m_rows <= 8:
        return m_rows                      # single block == full array dims
    m_up = ((m_rows + 7) // 8) * 8
    rows = min(rows, m_up)
    if rows >= m_rows:
        # Split so the "parallel" grid axis has >= 2 blocks (one per v7x TC);
        # harmless no-op cost on single-TC v5e/v6e.
        rows = max(8, ((rows // 2 + 7) // 8) * 8)
    return rows


def _make_triplet_kernel(margin: float, eps: float, tile_m: int,
                         d: int, k: int, m_actual: int):
    """Kernel body with static constants baked in.

    Inputs are (tile_m, d*k) blocks: each VMEM row packs k logical embedding
    rows of length d (k == 1 means no packing).  Writes one partial sum per
    grid step into a (1, 1) SMEM output block.
    """

    def kernel(za_ref, zp_ref, zn_ref, out_ref):
        a = za_ref[...].astype(jnp.float32)
        p = zp_ref[...].astype(jnp.float32)
        n = zn_ref[...].astype(jnp.float32)

        # torch.pairwise_distance: ||x - y + eps||_2 (eps added to the diff)
        dap = a - p + eps
        dan = a - n + eps
        d2p = dap * dap
        d2n = dan * dan

        base = pl.program_id(0) * tile_m
        sub = jax.lax.broadcasted_iota(jnp.int32, (tile_m, 1), 0)

        if k == 1:
            ssp = jnp.sum(d2p, axis=-1, keepdims=True)
            ssn = jnp.sum(d2n, axis=-1, keepdims=True)
            per = jnp.maximum(jnp.sqrt(ssp) - jnp.sqrt(ssn) + margin, 0.0)
            # Select (not multiply) so garbage/NaN in the ragged tail is dropped.
            per = jnp.where(base + sub < m_actual, per, 0.0)
            total = jnp.sum(per)
        else:
            lane = jax.lax.broadcasted_iota(jnp.int32, (tile_m, d * k), 1)
            total = jnp.float32(0.0)
            for g in range(k):            # static, small unrolled loop
                mg = (lane >= g * d) & (lane < (g + 1) * d)
                ssp = jnp.sum(jnp.where(mg, d2p, 0.0), axis=-1, keepdims=True)
                ssn = jnp.sum(jnp.where(mg, d2n, 0.0), axis=-1, keepdims=True)
                per = jnp.maximum(jnp.sqrt(ssp) - jnp.sqrt(ssn) + margin, 0.0)
                row = (base + sub) * k + g          # logical (unpacked) row id
                per = jnp.where(row < m_actual, per, 0.0)
                total = total + jnp.sum(per)

        out_ref[0, 0] = total

    return kernel


def batch_triplet_loss(z_a, z_p, z_n, *, batch_size: int, n_triplets: int,
                       margin: float, eps: float = 1e-6):
    """Pallas-backed equivalent of BatchTripletLoss.forward."""
    assert z_a.shape == z_p.shape == z_n.shape and z_a.ndim == 2
    assert z_a.dtype == z_p.dtype == z_n.dtype
    M, D = z_a.shape
    N = n_triplets * batch_size

    # Lane-dense packing for small D: pack k rows of length D into one 128-lane
    # row so HBM DMAs / VMEM buffers carry no lane padding.
    if D < 128 and 128 % D == 0 and M % (128 // D) == 0:
        k = 128 // D
    else:
        k = 1
    Mp, Dp = M // k, D * k
    if k > 1:
        z_a = z_a.reshape(Mp, Dp)
        z_p = z_p.reshape(Mp, Dp)
        z_n = z_n.reshape(Mp, Dp)

    itemsize = jnp.dtype(z_a.dtype).itemsize
    stream_budget, vmem_limit = _vmem_budgets()

    if 8 * _per_row_bytes(Dp, itemsize) > stream_budget:
        # TODO(synk): for very large D, add a second "arbitrary" grid axis over
        # the embedding dim with VMEM partial-sum scratch instead of failing.
        raise ValueError(f"Embedding dim D={D} too large for single-axis tiling")

    tile_m = _choose_tile_rows(Mp, Dp, itemsize, stream_budget)
    num_tiles = pl.cdiv(Mp, tile_m)

    kernel = _make_triplet_kernel(margin=float(margin), eps=float(eps),
                                  tile_m=tile_m, d=D, k=k, m_actual=M)

    row_spec = pl.BlockSpec((tile_m, Dp), lambda i: (i, 0))

    partials = pl.pallas_call(
        kernel,
        out_shape=jax.ShapeDtypeStruct((num_tiles, 1), jnp.float32),
        grid=(num_tiles,),
        in_specs=[row_spec, row_spec, row_spec],
        out_specs=pl.BlockSpec((1, 1), lambda i: (i, 0),
                               memory_space=pltpu.MemorySpace.SMEM),
        compiler_params=pltpu.CompilerParams(
            # Independent output block per step -> safe to split across cores
            # (lets both v7x TensorCores stream HBM concurrently).
            dimension_semantics=("parallel",),
            vmem_limit_bytes=vmem_limit,
        ),
    )(z_a, z_p, z_n)

    # Final tiny reduction + 1/N scale in XLA (free relative to the HBM streams).
    return jnp.sum(partials) / jnp.float32(N)


def _reference_loss(z_a, z_p, z_n, batch_size, n_triplets, margin, eps=1e-6):
    """Pure-JAX reference mirroring torch's TripletMarginLoss semantics."""
    z_a = z_a.astype(jnp.float32)
    z_p = z_p.astype(jnp.float32)
    z_n = z_n.astype(jnp.float32)
    d_pos = jnp.sqrt(jnp.sum((z_a - z_p + eps) ** 2, axis=-1))
    d_neg = jnp.sqrt(jnp.sum((z_a - z_n + eps) ** 2, axis=-1))
    per = jnp.maximum(d_pos - d_neg + margin, 0.0)
    return jnp.sum(per) / (n_triplets * batch_size)


if __name__ == "__main__":
    # Module config (deterministic, in-script) — matches the PyTorch spec.
    batch_size = 2
    n_triplets = 4
    margin = 0.3

    M = n_triplets * batch_size   # number of triplet rows
    D = 32                        # embedding dim (lane-dense packed path, k=4)

    key = jax.random.PRNGKey(0)
    ka, kp, kn = jax.random.split(key, 3)
    z_a = jax.random.normal(ka, (M, D), dtype=jnp.float32)
    z_p = jax.random.normal(kp, (M, D), dtype=jnp.float32)
    z_n = jax.random.normal(kn, (M, D), dtype=jnp.float32)

    loss = batch_triplet_loss(z_a, z_p, z_n, batch_size=batch_size,
                              n_triplets=n_triplets, margin=margin)
    loss = jax.block_until_ready(loss)
    ref = _reference_loss(z_a, z_p, z_n, batch_size, n_triplets, margin)
    assert jnp.allclose(loss, ref, rtol=1e-5, atol=1e-5), (loss, ref)

    # Larger M, packed path, ragged last tile (no wrapper padding, mask only).
    M2 = 2048 + 40
    k2a, k2p, k2n = jax.random.split(jax.random.PRNGKey(1), 3)
    z2_a = jax.random.normal(k2a, (M2, D), dtype=jnp.float32)
    z2_p = jax.random.normal(k2p, (M2, D), dtype=jnp.float32)
    z2_n = jax.random.normal(k2n, (M2, D), dtype=jnp.float32)
    bs2, nt2 = 8, M2 // 8
    loss2 = jax.block_until_ready(
        batch_triplet_loss(z2_a, z2_p, z2_n, batch_size=bs2,
                           n_triplets=nt2, margin=margin))
    ref2 = _reference_loss(z2_a, z2_p, z2_n, bs2, nt2, margin)
    assert jnp.allclose(loss2, ref2, rtol=1e-5, atol=1e-5), (loss2, ref2)

    # Unpacked fallback (D does not divide 128), bf16 inputs, ragged last tile.
    M3, D3 = 130, 96
    k3a, k3p, k3n = jax.random.split(jax.random.PRNGKey(2), 3)
    z3_a = jax.random.normal(k3a, (M3, D3), dtype=jnp.bfloat16)
    z3_p = jax.random.normal(k3p, (M3, D3), dtype=jnp.bfloat16)
    z3_n = jax.random.normal(k3n, (M3, D3), dtype=jnp.bfloat16)
    bs3, nt3 = 2, 65
    loss3 = jax.block_until_ready(
        batch_triplet_loss(z3_a, z3_p, z3_n, batch_size=bs3,
                           n_triplets=nt3, margin=margin))
    ref3 = _reference_loss(z3_a, z3_p, z3_n, bs3, nt3, margin)
    assert jnp.allclose(loss3, ref3, rtol=1e-5, atol=1e-4), (loss3, ref3)

    print("KERNEL_OK")
</pallas_src>

<mosaic_0001>
module attributes {stable_mosaic.version = 11 : i64} {
  func.func @kernel(%arg0: i32, %arg1: memref<2x128xf32, #tpu.memory_space<vmem>>, %arg2: memref<2x128xf32, #tpu.memory_space<vmem>>, %arg3: memref<2x128xf32, #tpu.memory_space<vmem>>, %arg4: memref<1x1xf32, #tpu.memory_space<smem>>) attributes {dimension_semantics = [#tpu.dimension_semantics<parallel>], iteration_bounds = array<i64: 1>, scalar_prefetch = 0 : i64, scratch_operands = 0 : i64, tpu.core_type = #tpu.core_type<tc>, window_params = [{transform_indices = @transform_0, window_bounds = array<i64: 2, 128>}, {transform_indices = @transform_1, window_bounds = array<i64: 2, 128>}, {transform_indices = @transform_2, window_bounds = array<i64: 2, 128>}, {transform_indices = @transform_3, window_bounds = array<i64: 1, 1>}]} {
    %c0 = arith.constant 0 : index
    %c0_0 = arith.constant 0 : index
    %0 = vector.load %arg1[%c0, %c0_0] : memref<2x128xf32, #tpu.memory_space<vmem>>, vector<2x128xf32>
    %c0_1 = arith.constant 0 : index
    %c0_2 = arith.constant 0 : index
    %1 = vector.load %arg2[%c0_1, %c0_2] : memref<2x128xf32, #tpu.memory_space<vmem>>, vector<2x128xf32>
    %c0_3 = arith.constant 0 : index
    %c0_4 = arith.constant 0 : index
    %2 = vector.load %arg3[%c0_3, %c0_4] : memref<2x128xf32, #tpu.memory_space<vmem>>, vector<2x128xf32>
    %3 = arith.subf %0, %1 : vector<2x128xf32>
    %cst = arith.constant 9.99999997E-7 : f32
    %4 = vector.broadcast %cst : f32 to vector<2x128xf32>
    %5 = arith.addf %3, %4 : vector<2x128xf32>
    %6 = arith.subf %0, %2 : vector<2x128xf32>
    %cst_5 = arith.constant 9.99999997E-7 : f32
    %7 = vector.broadcast %cst_5 : f32 to vector<2x128xf32>
    %8 = arith.addf %6, %7 : vector<2x128xf32>
    %9 = arith.mulf %5, %5 : vector<2x128xf32>
    %10 = arith.mulf %8, %8 : vector<2x128xf32>
    %c2_i32 = arith.constant 2 : i32
    %11 = arith.muli %arg0, %c2_i32 : i32
    %12 = tpu.iota {dimensions = array<i32: 0>} : vector<2x1xi32>
    %13 = tpu.iota {dimensions = array<i32: 1>} : vector<2x128xi32>
    %c0_i32 = arith.constant 0 : i32
    %14 = vector.broadcast %c0_i32 : i32 to vector<2x128xi32>
    %15 = arith.cmpi sge, %13, %14 : vector<2x128xi32>
    %c32_i32 = arith.constant 32 : i32
    %16 = vector.broadcast %c32_i32 : i32 to vector<2x128xi32>
    %17 = arith.cmpi slt, %13, %16 : vector<2x128xi32>
    %18 = arith.andi %15, %17 : vector<2x128xi1>
    %cst_6 = arith.constant 0.000000e+00 : f32
    %19 = vector.broadcast %cst_6 : f32 to vector<2x128xf32>
    %20 = arith.select %18, %9, %19 : vector<2x128xi1>, vector<2x128xf32>
    %cst_7 = arith.constant dense<0.000000e+00> : vector<2xf32>
    %21 = vector.multi_reduction <add>, %20, %cst_7 [1] : vector<2x128xf32> to vector<2xf32>
    %22 = vector.shape_cast %21 : vector<2xf32> to vector<2x1xf32>
    %cst_8 = arith.constant 0.000000e+00 : f32
    %23 = vector.broadcast %cst_8 : f32 to vector<2x128xf32>
    %24 = arith.select %18, %10, %23 : vector<2x128xi1>, vector<2x128xf32>
    %cst_9 = arith.constant dense<0.000000e+00> : vector<2xf32>
    %25 = vector.multi_reduction <add>, %24, %cst_9 [1] : vector<2x128xf32> to vector<2xf32>
    %26 = vector.shape_cast %25 : vector<2xf32> to vector<2x1xf32>
    %27 = math.sqrt %22 : vector<2x1xf32>
    %28 = math.sqrt %26 : vector<2x1xf32>
    %29 = arith.subf %27, %28 : vector<2x1xf32>
    %cst_10 = arith.constant 3.000000e-01 : f32
    %30 = vector.broadcast %cst_10 : f32 to vector<2x1xf32>
    %31 = arith.addf %29, %30 : vector<2x1xf32>
    %cst_11 = arith.constant 0.000000e+00 : f32
    %32 = vector.broadcast %cst_11 : f32 to vector<2x1xf32>
    %33 = arith.maximumf %31, %32 : vector<2x1xf32>
    %34 = vector.broadcast %11 : i32 to vector<2x1xi32>
    %35 = arith.addi %34, %12 : vector<2x1xi32>
    %c4_i32 = arith.constant 4 : i32
    %36 = vector.broadcast %c4_i32 : i32 to vector<2x1xi32>
    %37 = arith.muli %35, %36 : vector<2x1xi32>
    %c0_i32_12 = arith.constant 0 : i32
    %38 = vector.broadcast %c0_i32_12 : i32 to vector<2x1xi32>
    %39 = arith.addi %37, %38 : vector<2x1xi32>
    %c8_i32 = arith.constant 8 : i32
    %40 = vector.broadcast %c8_i32 : i32 to vector<2x1xi32>
    %41 = arith.cmpi slt, %39, %40 : vector<2x1xi32>
    %cst_13 = arith.constant 0.000000e+00 : f32
    %42 = vector.broadcast %cst_13 : f32 to vector<2x1xf32>
    %43 = arith.select %41, %33, %42 : vector<2x1xi1>, vector<2x1xf32>
    %44 = vector.shape_cast %43 : vector<2x1xf32> to vector<1x2x1xf32>
    %cst_14 = arith.constant dense<0.000000e+00> : vector<1xf32>
    %45 = vector.multi_reduction <add>, %44, %cst_14 [1, 2] : vector<1x2x1xf32> to vector<1xf32>
    %46 = vector.shape_cast %45 : vector<1xf32> to vector<1x1x1xf32>
    %47 = vector.extract %46[0, 0, 0] : f32 from vector<1x1x1xf32>
    %cst_15 = arith.constant 0.000000e+00 : f32
    %48 = arith.addf %cst_15, %47 : f32
    %c32_i32_16 = arith.constant 32 : i32
    %49 = vector.broadcast %c32_i32_16 : i32 to vector<2x128xi32>
    %50 = arith.cmpi sge, %13, %49 : vector<2x128xi32>
    %c64_i32 = arith.constant 64 : i32
    %51 = vector.broadcast %c64_i32 : i32 to vector<2x128xi32>
    %52 = arith.cmpi slt, %13, %51 : vector<2x128xi32>
    %53 = arith.andi %50, %52 : vector<2x128xi1>
    %cst_17 = arith.constant 0.000000e+00 : f32
    %54 = vector.broadcast %cst_17 : f32 to vector<2x128xf32>
    %55 = arith.select %53, %9, %54 : vector<2x128xi1>, vector<2x128xf32>
    %cst_18 = arith.constant dense<0.000000e+00> : vector<2xf32>
    %56 = vector.multi_reduction <add>, %55, %cst_18 [1] : vector<2x128xf32> to vector<2xf32>
    %57 = vector.shape_cast %56 : vector<2xf32> to vector<2x1xf32>
    %cst_19 = arith.constant 0.000000e+00 : f32
    %58 = vector.broadcast %cst_19 : f32 to vector<2x128xf32>
    %59 = arith.select %53, %10, %58 : vector<2x128xi1>, vector<2x128xf32>
    %cst_20 = arith.constant dense<0.000000e+00> : vector<2xf32>
    %60 = vector.multi_reduction <add>, %59, %cst_20 [1] : vector<2x128xf32> to vector<2xf32>
    %61 = vector.shape_cast %60 : vector<2xf32> to vector<2x1xf32>
    %62 = math.sqrt %57 : vector<2x1xf32>
    %63 = math.sqrt %61 : vector<2x1xf32>
    %64 = arith.subf %62, %63 : vector<2x1xf32>
    %cst_21 = arith.constant 3.000000e-01 : f32
    %65 = vector.broadcast %cst_21 : f32 to vector<2x1xf32>
    %66 = arith.addf %64, %65 : vector<2x1xf32>
    %cst_22 = arith.constant 0.000000e+00 : f32
    %67 = vector.broadcast %cst_22 : f32 to vector<2x1xf32>
    %68 = arith.maximumf %66, %67 : vector<2x1xf32>
    %69 = vector.broadcast %11 : i32 to vector<2x1xi32>
    %70 = arith.addi %69, %12 : vector<2x1xi32>
    %c4_i32_23 = arith.constant 4 : i32
    %71 = vector.broadcast %c4_i32_23 : i32 to vector<2x1xi32>
    %72 = arith.muli %70, %71 : vector<2x1xi32>
    %c1_i32 = arith.constant 1 : i32
    %73 = vector.broadcast %c1_i32 : i32 to vector<2x1xi32>
    %74 = arith.addi %72, %73 : vector<2x1xi32>
    %c8_i32_24 = arith.constant 8 : i32
    %75 = vector.broadcast %c8_i32_24 : i32 to vector<2x1xi32>
    %76 = arith.cmpi slt, %74, %75 : vector<2x1xi32>
    %cst_25 = arith.constant 0.000000e+00 : f32
    %77 = vector.broadcast %cst_25 : f32 to vector<2x1xf32>
    %78 = arith.select %76, %68, %77 : vector<2x1xi1>, vector<2x1xf32>
    %79 = vector.shape_cast %78 : vector<2x1xf32> to vector<1x2x1xf32>
    %cst_26 = arith.constant dense<0.000000e+00> : vector<1xf32>
    %80 = vector.multi_reduction <add>, %79, %cst_26 [1, 2] : vector<1x2x1xf32> to vector<1xf32>
    %81 = vector.shape_cast %80 : vector<1xf32> to vector<1x1x1xf32>
    %82 = vector.extract %81[0, 0, 0] : f32 from vector<1x1x1xf32>
    %83 = arith.addf %48, %82 : f32
    %c64_i32_27 = arith.constant 64 : i32
    %84 = vector.broadcast %c64_i32_27 : i32 to vector<2x128xi32>
    %85 = arith.cmpi sge, %13, %84 : vector<2x128xi32>
    %c96_i32 = arith.constant 96 : i32
    %86 = vector.broadcast %c96_i32 : i32 to vector<2x128xi32>
    %87 = arith.cmpi slt, %13, %86 : vector<2x128xi32>
    %88 = arith.andi %85, %87 : vector<2x128xi1>
    %cst_28 = arith.constant 0.000000e+00 : f32
    %89 = vector.broadcast %cst_28 : f32 to vector<2x128xf32>
    %90 = arith.select %88, %9, %89 : vector<2x128xi1>, vector<2x128xf32>
    %cst_29 = arith.constant dense<0.000000e+00> : vector<2xf32>
    %91 = vector.multi_reduction <add>, %90, %cst_29 [1] : vector<2x128xf32> to vector<2xf32>
    %92 = vector.shape_cast %91 : vector<2xf32> to vector<2x1xf32>
    %cst_30 = arith.constant 0.000000e+00 : f32
    %93 = vector.broadcast %cst_30 : f32 to vector<2x128xf32>
    %94 = arith.select %88, %10, %93 : vector<2x128xi1>, vector<2x128xf32>
    %cst_31 = arith.constant dense<0.000000e+00> : vector<2xf32>
    %95 = vector.multi_reduction <add>, %94, %cst_31 [1] : vector<2x128xf32> to vector<2xf32>
    %96 = vector.shape_cast %95 : vector<2xf32> to vector<2x1xf32>
    %97 = math.sqrt %92 : vector<2x1xf32>
    %98 = math.sqrt %96 : vector<2x1xf32>
    %99 = arith.subf %97, %98 : vector<2x1xf32>
    %cst_32 = arith.constant 3.000000e-01 : f32
    %100 = vector.broadcast %cst_32 : f32 to vector<2x1xf32>
    %101 = arith.addf %99, %100 : vector<2x1xf32>
    %cst_33 = arith.constant 0.000000e+00 : f32
    %102 = vector.broadcast %cst_33 : f32 to vector<2x1xf32>
    %103 = arith.maximumf %101, %102 : vector<2x1xf32>
    %104 = vector.broadcast %11 : i32 to vector<2x1xi32>
    %105 = arith.addi %104, %12 : vector<2x1xi32>
    %c4_i32_34 = arith.constant 4 : i32
    %106 = vector.broadcast %c4_i32_34 : i32 to vector<2x1xi32>
    %107 = arith.muli %105, %106 : vector<2x1xi32>
    %c2_i32_35 = arith.constant 2 : i32
    %108 = vector.broadcast %c2_i32_35 : i32 to vector<2x1xi32>
    %109 = arith.addi %107, %108 : vector<2x1xi32>
    %c8_i32_36 = arith.constant 8 : i32
    %110 = vector.broadcast %c8_i32_36 : i32 to vector<2x1xi32>
    %111 = arith.cmpi slt, %109, %110 : vector<2x1xi32>
    %cst_37 = arith.constant 0.000000e+00 : f32
    %112 = vector.broadcast %cst_37 : f32 to vector<2x1xf32>
    %113 = arith.select %111, %103, %112 : vector<2x1xi1>, vector<2x1xf32>
    %114 = vector.shape_cast %113 : vector<2x1xf32> to vector<1x2x1xf32>
    %cst_38 = arith.constant dense<0.000000e+00> : vector<1xf32>
    %115 = vector.multi_reduction <add>, %114, %cst_38 [1, 2] : vector<1x2x1xf32> to vector<1xf32>
    %116 = vector.shape_cast %115 : vector<1xf32> to vector<1x1x1xf32>
    %117 = vector.extract %116[0, 0, 0] : f32 from vector<1x1x1xf32>
    %118 = arith.addf %83, %117 : f32
    %c96_i32_39 = arith.constant 96 : i32
    %119 = vector.broadcast %c96_i32_39 : i32 to vector<2x128xi32>
    %120 = arith.cmpi sge, %13, %119 : vector<2x128xi32>
    %c128_i32 = arith.constant 128 : i32
    %121 = vector.broadcast %c128_i32 : i32 to vector<2x128xi32>
    %122 = arith.cmpi slt, %13, %121 : vector<2x128xi32>
    %123 = arith.andi %120, %122 : vector<2x128xi1>
    %cst_40 = arith.constant 0.000000e+00 : f32
    %124 = vector.broadcast %cst_40 : f32 to vector<2x128xf32>
    %125 = arith.select %123, %9, %124 : vector<2x128xi1>, vector<2x128xf32>
    %cst_41 = arith.constant dense<0.000000e+00> : vector<2xf32>
    %126 = vector.multi_reduction <add>, %125, %cst_41 [1] : vector<2x128xf32> to vector<2xf32>
    %127 = vector.shape_cast %126 : vector<2xf32> to vector<2x1xf32>
    %cst_42 = arith.constant 0.000000e+00 : f32
    %128 = vector.broadcast %cst_42 : f32 to vector<2x128xf32>
    %129 = arith.select %123, %10, %128 : vector<2x128xi1>, vector<2x128xf32>
    %cst_43 = arith.constant dense<0.000000e+00> : vector<2xf32>
    %130 = vector.multi_reduction <add>, %129, %cst_43 [1] : vector<2x128xf32> to vector<2xf32>
    %131 = vector.shape_cast %130 : vector<2xf32> to vector<2x1xf32>
    %132 = math.sqrt %127 : vector<2x1xf32>
    %133 = math.sqrt %131 : vector<2x1xf32>
    %134 = arith.subf %132, %133 : vector<2x1xf32>
    %cst_44 = arith.constant 3.000000e-01 : f32
    %135 = vector.broadcast %cst_44 : f32 to vector<2x1xf32>
    %136 = arith.addf %134, %135 : vector<2x1xf32>
    %cst_45 = arith.constant 0.000000e+00 : f32
    %137 = vector.broadcast %cst_45 : f32 to vector<2x1xf32>
    %138 = arith.maximumf %136, %137 : vector<2x1xf32>
    %139 = vector.broadcast %11 : i32 to vector<2x1xi32>
    %140 = arith.addi %139, %12 : vector<2x1xi32>
    %c4_i32_46 = arith.constant 4 : i32
    %141 = vector.broadcast %c4_i32_46 : i32 to vector<2x1xi32>
    %142 = arith.muli %140, %141 : vector<2x1xi32>
    %c3_i32 = arith.constant 3 : i32
    %143 = vector.broadcast %c3_i32 : i32 to vector<2x1xi32>
    %144 = arith.addi %142, %143 : vector<2x1xi32>
    %c8_i32_47 = arith.constant 8 : i32
    %145 = vector.broadcast %c8_i32_47 : i32 to vector<2x1xi32>
    %146 = arith.cmpi slt, %144, %145 : vector<2x1xi32>
    %cst_48 = arith.constant 0.000000e+00 : f32
    %147 = vector.broadcast %cst_48 : f32 to vector<2x1xf32>
    %148 = arith.select %146, %138, %147 : vector<2x1xi1>, vector<2x1xf32>
    %149 = vector.shape_cast %148 : vector<2x1xf32> to vector<1x2x1xf32>
    %cst_49 = arith.constant dense<0.000000e+00> : vector<1xf32>
    %150 = vector.multi_reduction <add>, %149, %cst_49 [1, 2] : vector<1x2x1xf32> to vector<1xf32>
    %151 = vector.shape_cast %150 : vector<1xf32> to vector<1x1x1xf32>
    %152 = vector.extract %151[0, 0, 0] : f32 from vector<1x1x1xf32>
    %153 = arith.addf %118, %152 : f32
    %c0_50 = arith.constant 0 : index
    %c0_51 = arith.constant 0 : index
    %154 = memref.load %arg4[%c0_50, %c0_51] : memref<1x1xf32, #tpu.memory_space<smem>>
    memref.store %153, %arg4[%c0_50, %c0_51] : memref<1x1xf32, #tpu.memory_space<smem>>
    return
  }
  func.func @transform_0(%arg0: i32) -> (i32, i32) {
    %c0_i32 = arith.constant 0 : i32
    %c0_i32_0 = arith.constant 0 : i32
    return %arg0, %c0_i32 : i32, i32
  }
  func.func @transform_1(%arg0: i32) -> (i32, i32) {
    %c0_i32 = arith.constant 0 : i32
    %c0_i32_0 = arith.constant 0 : i32
    return %arg0, %c0_i32 : i32, i32
  }
  func.func @transform_2(%arg0: i32) -> (i32, i32) {
    %c0_i32 = arith.constant 0 : i32
    %c0_i32_0 = arith.constant 0 : i32
    return %arg0, %c0_i32 : i32, i32
  }
  func.func @transform_3(%arg0: i32) -> (i32, i32) {
    %c0_i32 = arith.constant 0 : i32
    %c0_i32_0 = arith.constant 0 : i32
    return %arg0, %c0_i32 : i32, i32
  }
}

</mosaic_0001>

<llo_original>
// kernel: tpu_custom_call.1
$region0: #{tpu_custom_call.1}
  #allocation0 [shape = 'u32[]', space=smem, size = 0x4, offset = 0x4, fixed_abs, tag = 'smem constant byte address 0x4 - core index']
  #allocation1 [shape = 'u32[72,128]{1,0:T(1,128)}', space=vmem, size = 0x9000, scoped, tag = 'internal scratch']
  %s0 = inlined_call_operand.hbm [shape: f32[2,128], index: 0, kind: input, shape index: {}]
  %s1 = inlined_call_operand.hbm [shape: f32[2,128], index: 1, kind: input, shape index: {}]
  %s2 = inlined_call_operand.hbm [shape: f32[2,128], index: 2, kind: input, shape index: {}]
  %s3 = inlined_call_operand.hbm [shape: f32[1,1], index: 3, kind: output, shape index: {}]
  %s4 = sld [smem:[#allocation0]]
  $region34: #{tpu_custom_call.1} parent=0
    _
  %s6 = ssub.s32 1, %s4
  %s7 = scalar_select 0, %s6, %s4
  $region1: #{tpu_custom_call.1} parent=0
    #allocation2 [shape = 'u8[1024]{0}', space=vmem, size = 0x400, scoped, tag = 'input window, operand 0, single buffered']
    #allocation3 [shape = 's32[1]{0}', space=sflag, size = 0x4, scoped, tag = 'scoped memory for tpu_custom_call.1']
    #allocation4 [shape = 's32[1]{0}', space=sflag, size = 0x4, scoped, tag = 'scoped memory for tpu_custom_call.1']
    #allocation5 [shape = 'u8[1024]{0}', space=vmem, size = 0x400, scoped, tag = 'input window, operand 1, single buffered']
    #allocation6 [shape = 's32[1]{0}', space=sflag, size = 0x4, scoped, tag = 'scoped memory for tpu_custom_call.1']
    #allocation7 [shape = 'u8[1024]{0}', space=vmem, size = 0x400, scoped, tag = 'input window, operand 2, single buffered']
    #allocation8 [shape = 'u8[512]{0}', space=smem, size = 0x200, scoped, tag = 'output window, operand 0, single buffered']
    %8 = vsyncpa [#allocation3], 0
    %9 = vsyncpa [#allocation6], 0
    %10 = vsyncpa [#allocation4], 0
    // Predicated region
    $region2: #{tpu_custom_call.1} parent=1 // pred_check
      _
    $region3: #{tpu_custom_call.1} parent=1 // pred_check_branch
      %12 = sbr.rel (0) target = $region5
    $region4: #{tpu_custom_call.1} parent=1 // pred_region
      %14 = vsyncadd [#allocation3], 0
      %s16 = sshll.u32 %s0, 4
      %s17 = int_to_ptr.hbm [resolvable:$true] %s16
      %s18 = sshll.u32 [#allocation2], 4
      %s19 = int_to_ptr.vmem [resolvable:$true] %s18
      %21 = dma.hbm_to_vmem [thread:$0]  %s17, 32, %s19, [#allocation3]
    $region5: #{tpu_custom_call.1} parent=1 // pred_fallthru
      _
    // Predicated region
    $region6: #{tpu_custom_call.1} parent=1 // pred_check
      _
    $region7: #{tpu_custom_call.1} parent=1 // pred_check_branch
      %23 = sbr.rel (0) target = $region9
    $region8: #{tpu_custom_call.1} parent=1 // pred_region
      %25 = vsyncadd [#allocation6], 0
      %s27 = sshll.u32 %s1, 4
      %s28 = int_to_ptr.hbm [resolvable:$true] %s27
      %s29 = sshll.u32 [#allocation5], 4
      %s30 = int_to_ptr.vmem [resolvable:$true] %s29
      %32 = dma.hbm_to_vmem [thread:$0]  %s28, 32, %s30, [#allocation6]
    $region9: #{tpu_custom_call.1} parent=1 // pred_fallthru
      _
    // Predicated region
    $region10: #{tpu_custom_call.1} parent=1 // pred_check
      _
    $region11: #{tpu_custom_call.1} parent=1 // pred_check_branch
      %34 = sbr.rel (0) target = $region13
    $region12: #{tpu_custom_call.1} parent=1 // pred_region
      %36 = vsyncadd [#allocation6], 0
      %s38 = sshll.u32 %s2, 4
      %s39 = int_to_ptr.hbm [resolvable:$true] %s38
      %s40 = sshll.u32 [#allocation7], 4
      %s41 = int_to_ptr.vmem [resolvable:$true] %s40
      %43 = dma.hbm_to_vmem [thread:$0]  %s39, 32, %s41, [#allocation6]
    $region13: #{tpu_custom_call.1} parent=1 // pred_fallthru
      _
    // Predicated region
    $region14: #{tpu_custom_call.1} parent=1 // pred_check
      _
    $region15: #{tpu_custom_call.1} parent=1 // pred_check_branch
      %45 = sbr.rel (0) target = $region17
    $region16: #{tpu_custom_call.1} parent=1 // pred_region
      %47 = dma.done [#allocation3], 32
    $region17: #{tpu_custom_call.1} parent=1 // pred_fallthru
      _
    // Predicated region
    $region18: #{tpu_custom_call.1} parent=1 // pred_check
      _
    $region19: #{tpu_custom_call.1} parent=1 // pred_check_branch
      %49 = sbr.rel (0) target = $region21
    $region20: #{tpu_custom_call.1} parent=1 // pred_region
      %51 = dma.done [#allocation6], 32
    $region21: #{tpu_custom_call.1} parent=1 // pred_fallthru
      _
    // Predicated region
    $region22: #{tpu_custom_call.1} parent=1 // pred_check
      _
    $region23: #{tpu_custom_call.1} parent=1 // pred_check_branch
      %53 = sbr.rel (0) target = $region25
    $region24: #{tpu_custom_call.1} parent=1 // pred_region
      %55 = dma.done [#allocation6], 32
    $region25: #{tpu_custom_call.1} parent=1 // pred_fallthru
      _
    %v56 = vld [vmem:[#allocation2] sm:$0x3]
    %v57 = vld [vmem:[#allocation5] sm:$0x3]
    %v58 = vld [vmem:[#allocation7] sm:$0x3]
    %v59 = vsub.f32 %v56, %v57
    %v60 = vadd.f32 %v59, 1e-06
    %v61 = vsub.f32 %v56, %v58
    %v62 = vadd.f32 %v61, 1e-06
    %v63 = vmul.f32 %v60, %v60
    %v64 = vmul.f32 %v62, %v62
    %s65 = smul.u32 0, 2
    %v66 = vlaneseq
    %v67 = vshrl.u32 %v66, 7
    %v68 = vlaneseq
    %v69 = vand.u32 %v68, 127
    %vm70 = vcmp.ge.s32.totalorder %v69, 0
    %vm71 = vcmp.lt.s32.totalorder %v69, 32
    %vm72 = vmand %vm70, %vm71
    %v73 = vsel %vm72, %v63, 0.0
    %vm74 = vcmask 1041408
    %v75 = vsel %vm74, %v73, 0.0
    %76 = vadd.xlane.f32.xlu0 %v75
    %v77 = vpop.xlane.xlu0 %76
    %v78 = vsel %vm72, %v64, 0.0
    %v79 = vsel %vm74, %v78, 0.0
    %80 = vadd.xlane.f32.xlu0 %v79
    %v81 = vpop.xlane.xlu0 %80
    %v82 = vrsqrt.pop %v77
    %v83 = vmul.f32 %v82, %v77
    %v84 = vmul.f32 %v83, %v82
    %v85 = vmul.f32 0.5, %v84
    %v86 = vsub.f32 1.5, %v85
    %v87 = vmul.f32 %v82, %v86
    %v88 = vmul.f32 %v77, %v87
    %vm89 = vcmp.eq.f32.partialorder %v77, inf
    %v90 = vsel %vm89, %v77, %v88
    %vm91 = vcmp.eq.f32.partialorder %v77, 0.0
    %v92 = vand.u32 %v77, 2147483648
    %v93 = vsel %vm91, %v92, %v90
    %v94 = vrsqrt.pop %v81
    %v95 = vmul.f32 %v94, %v81
    %v96 = vmul.f32 %v95, %v94
    %v97 = vmul.f32 0.5, %v96
    %v98 = vsub.f32 1.5, %v97
    %v99 = vmul.f32 %v94, %v98
    %v100 = vmul.f32 %v81, %v99
    %vm101 = vcmp.eq.f32.partialorder %v81, inf
    %v102 = vsel %vm101, %v81, %v100
    %vm103 = vcmp.eq.f32.partialorder %v81, 0.0
    %v104 = vand.u32 %v81, 2147483648
    %v105 = vsel %vm103, %v104, %v102
    %v106 = vsub.f32 %v93, %v105
    %v107 = vadd.f32 %v106, 0.3
    %v108 = vmax.f32 %v107, 0.0
    %v109 = vstv %s65
    %v110 = vadd.s32 %v109, %v67
    %v111 = vmul.u32 %v110, 4
    %vm112 = vcmp.lt.s32.totalorder %v111, 8
    %v113 = vsel %vm112, %v108, 0.0
    %vm114 = vcmask 1024
    %v115 = vsel %vm114, %v113, 0.0
    %116 = vadd.xlane.f32.xlu0 %v115
    %v117 = vpop.xlane.xlu0 %116
    %v118 = vrot.slane %v117, 4
    %v119 = vadd.f32 %v117, %v118
    %v120 = vrot.slane %v119, 2
    %v121 = vadd.f32 %v119, %v120
    %v122 = vrot.slane %v121, 1
    %v123 = vadd.f32 %v121, %v122
    %s124 = vtos %v123
    %s125 = sadd.f32 %s124, 0.0
    %vm126 = vcmp.ge.s32.totalorder %v69, 32
    %vm127 = vcmp.lt.s32.totalorder %v69, 64
    %vm128 = vmand %vm126, %vm127
    %v129 = vsel %vm128, %v63, 0.0
    %v130 = vsel %vm74, %v129, 0.0
    %131 = vadd.xlane.f32.xlu0 %v130
    %v132 = vpop.xlane.xlu0 %131
    %v133 = vsel %vm128, %v64, 0.0
    %v134 = vsel %vm74, %v133, 0.0
    %135 = vadd.xlane.f32.xlu0 %v134
    %v136 = vpop.xlane.xlu0 %135
    %v137 = vrsqrt.pop %v132
    %v138 = vmul.f32 %v137, %v132
    %v139 = vmul.f32 %v138, %v137
    %v140 = vmul.f32 0.5, %v139
    %v141 = vsub.f32 1.5, %v140
    %v142 = vmul.f32 %v137, %v141
    %v143 = vmul.f32 %v132, %v142
    %vm144 = vcmp.eq.f32.partialorder %v132, inf
    %v145 = vsel %vm144, %v132, %v143
    %vm146 = vcmp.eq.f32.partialorder %v132, 0.0
    %v147 = vand.u32 %v132, 2147483648
    %v148 = vsel %vm146, %v147, %v145
    %v149 = vrsqrt.pop %v136
    %v150 = vmul.f32 %v149, %v136
    %v151 = vmul.f32 %v150, %v149
    %v152 = vmul.f32 0.5, %v151
    %v153 = vsub.f32 1.5, %v152
    %v154 = vmul.f32 %v149, %v153
    %v155 = vmul.f32 %v136, %v154
    %vm156 = vcmp.eq.f32.partialorder %v136, inf
    %v157 = vsel %vm156, %v136, %v155
    %vm158 = vcmp.eq.f32.partialorder %v136, 0.0
    %v159 = vand.u32 %v136, 2147483648
    %v160 = vsel %vm158, %v159, %v157
    %v161 = vsub.f32 %v148, %v160
    %v162 = vadd.f32 %v161, 0.3
    %v163 = vmax.f32 %v162, 0.0
    %v164 = vadd.s32 %v111, 1
    %vm165 = vcmp.lt.s32.totalorder %v164, 8
    %v166 = vsel %vm165, %v163, 0.0
    %v167 = vsel %vm114, %v166, 0.0
    %168 = vadd.xlane.f32.xlu0 %v167
    %v169 = vpop.xlane.xlu0 %168
    %v170 = vrot.slane %v169, 4
    %v171 = vadd.f32 %v169, %v170
    %v172 = vrot.slane %v171, 2
    %v173 = vadd.f32 %v171, %v172
    %v174 = vrot.slane %v173, 1
    %v175 = vadd.f32 %v173, %v174
    %s176 = vtos %v175
    %s177 = sadd.f32 %s125, %s176
    %vm178 = vcmp.ge.s32.totalorder %v69, 64
    %vm179 = vcmp.lt.s32.totalorder %v69, 96
    %vm180 = vmand %vm178, %vm179
    %v181 = vsel %vm180, %v63, 0.0
    %v182 = vsel %vm74, %v181, 0.0
    %183 = vadd.xlane.f32.xlu0 %v182
    %v184 = vpop.xlane.xlu0 %183
    %v185 = vsel %vm180, %v64, 0.0
    %v186 = vsel %vm74, %v185, 0.0
    %187 = vadd.xlane.f32.xlu0 %v186
    %v188 = vpop.xlane.xlu0 %187
    %v189 = vrsqrt.pop %v184
    %v190 = vmul.f32 %v189, %v184
    %v191 = vmul.f32 %v190, %v189
    %v192 = vmul.f32 0.5, %v191
    %v193 = vsub.f32 1.5, %v192
    %v194 = vmul.f32 %v189, %v193
    %v195 = vmul.f32 %v184, %v194
    %vm196 = vcmp.eq.f32.partialorder %v184, inf
    %v197 = vsel %vm196, %v184, %v195
    %vm198 = vcmp.eq.f32.partialorder %v184, 0.0
    %v199 = vand.u32 %v184, 2147483648
    %v200 = vsel %vm198, %v199, %v197
    %v201 = vrsqrt.pop %v188
    %v202 = vmul.f32 %v201, %v188
    %v203 = vmul.f32 %v202, %v201
    %v204 = vmul.f32 0.5, %v203
    %v205 = vsub.f32 1.5, %v204
    %v206 = vmul.f32 %v201, %v205
    %v207 = vmul.f32 %v188, %v206
    %vm208 = vcmp.eq.f32.partialorder %v188, inf
    %v209 = vsel %vm208, %v188, %v207
    %vm210 = vcmp.eq.f32.partialorder %v188, 0.0
    %v211 = vand.u32 %v188, 2147483648
    %v212 = vsel %vm210, %v211, %v209
    %v213 = vsub.f32 %v200, %v212
    %v214 = vadd.f32 %v213, 0.3
    %v215 = vmax.f32 %v214, 0.0
    %v216 = vadd.s32 %v111, 2
    %vm217 = vcmp.lt.s32.totalorder %v216, 8
    %v218 = vsel %vm217, %v215, 0.0
    %v219 = vsel %vm114, %v218, 0.0
    %220 = vadd.xlane.f32.xlu0 %v219
    %v221 = vpop.xlane.xlu0 %220
    %v222 = vrot.slane %v221, 4
    %v223 = vadd.f32 %v221, %v222
    %v224 = vrot.slane %v223, 2
    %v225 = vadd.f32 %v223, %v224
    %v226 = vrot.slane %v225, 1
    %v227 = vadd.f32 %v225, %v226
    %s228 = vtos %v227
    %s229 = sadd.f32 %s177, %s228
    %vm230 = vcmp.ge.s32.totalorder %v69, 96
    %vm231 = vcmp.lt.s32.totalorder %v69, 128
    %vm232 = vmand %vm230, %vm231
    %v233 = vsel %vm232, %v63, 0.0
    %v234 = vsel %vm74, %v233, 0.0
    %235 = vadd.xlane.f32.xlu0 %v234
    %v236 = vpop.xlane.xlu0 %235
    %v237 = vsel %vm232, %v64, 0.0
    %v238 = vsel %vm74, %v237, 0.0
    %239 = vadd.xlane.f32.xlu0 %v238
    %v240 = vpop.xlane.xlu0 %239
    %v241 = vrsqrt.pop %v236
    %v242 = vmul.f32 %v241, %v236
    %v243 = vmul.f32 %v242, %v241
    %v244 = vmul.f32 0.5, %v243
    %v245 = vsub.f32 1.5, %v244
    %v246 = vmul.f32 %v241, %v245
    %v247 = vmul.f32 %v236, %v246
    %vm248 = vcmp.eq.f32.partialorder %v236, inf
    %v249 = vsel %vm248, %v236, %v247
    %vm250 = vcmp.eq.f32.partialorder %v236, 0.0
    %v251 = vand.u32 %v236, 2147483648
    %v252 = vsel %vm250, %v251, %v249
    %v253 = vrsqrt.pop %v240
    %v254 = vmul.f32 %v253, %v240
    %v255 = vmul.f32 %v254, %v253
    %v256 = vmul.f32 0.5, %v255
    %v257 = vsub.f32 1.5, %v256
    %v258 = vmul.f32 %v253, %v257
    %v259 = vmul.f32 %v240, %v258
    %vm260 = vcmp.eq.f32.partialorder %v240, inf
    %v261 = vsel %vm260, %v240, %v259
    %vm262 = vcmp.eq.f32.partialorder %v240, 0.0
    %v263 = vand.u32 %v240, 2147483648
    %v264 = vsel %vm262, %v263, %v261
    %v265 = vsub.f32 %v252, %v264
    %v266 = vadd.f32 %v265, 0.3
    %v267 = vmax.f32 %v266, 0.0
    %v268 = vadd.s32 %v111, 3
    %vm269 = vcmp.lt.s32.totalorder %v268, 8
    %v270 = vsel %vm269, %v267, 0.0
    %v271 = vsel %vm114, %v270, 0.0
    %272 = vadd.xlane.f32.xlu0 %v271
    %v273 = vpop.xlane.xlu0 %272
    %v274 = vrot.slane %v273, 4
    %v275 = vadd.f32 %v273, %v274
    %v276 = vrot.slane %v275, 2
    %v277 = vadd.f32 %v275, %v276
    %v278 = vrot.slane %v277, 1
    %v279 = vadd.f32 %v277, %v278
    %s280 = vtos %v279
    %s281 = sadd.f32 %s229, %s280
    %s282 = scalar_lea.smem [#allocation8], 0
    %283 = sst [smem:[%s282]] %s281
    // Predicated region
    $region26: #{tpu_custom_call.1} parent=1 // pred_check
      _
    $region27: #{tpu_custom_call.1} parent=1 // pred_check_branch
      %285 = sbr.rel (0) target = $region29
    $region28: #{tpu_custom_call.1} parent=1 // pred_region
      %287 = vsyncadd [#allocation4], 0
      %s289 = sshll.u32 %s3, 4
      %s290 = int_to_ptr.hbm [resolvable:$true] %s289
      %292 = dma.smem_to_hbm [#allocation8], 16, %s290, [#allocation4]
    $region29: #{tpu_custom_call.1} parent=1 // pred_fallthru
      _
    // Predicated region
    $region30: #{tpu_custom_call.1} parent=1 // pred_check
      _
    $region31: #{tpu_custom_call.1} parent=1 // pred_check_branch
      %294 = sbr.rel (0) target = $region33
    $region32: #{tpu_custom_call.1} parent=1 // pred_region
      %296 = dma.done [#allocation4], 16
    $region33: #{tpu_custom_call.1} parent=1 // pred_fallthru
      _
    %297 = sfence
    %298 = vsyncpa [#allocation3], 1
    %299 = vsyncpa [#allocation6], 1
    %300 = vsyncpa [#allocation4], 1

</llo_original>
